<compile_context>
chip_gen: v6e
topology: v6e:2x2x1
jax: 0.10.0
libtpu: 0.0.40
codegen_flags: <defaults>
</compile_context>

<pallas_src>
import functools

import jax
import jax.numpy as jnp
from jax.experimental import pallas as pl
from jax.experimental.pallas import tpu as pltpu

_LANES = 128
_MAX_TILE_ROWS = 2048   # (2048, 128) f32 = 1 MiB per input block
_NUM_CORES = 2          # split across the 2 TensorCores on v7x; no-op on v5e/v6e


def _round_up(x, m):
    return ((x + m - 1) // m) * m


def _edge_loss_sums_kernel(pred_ref, target_ref, acc_ref, *, with_logits: bool):
    """Accumulate vreg-shaped partials of sum(t), sum(bce), sum(t*bce).

    acc_ref block shape: (1, 3, 8, 128); resident across the inner
    ("arbitrary") grid axis, one block per core along the parallel axis.
    """
    i = pl.program_id(1)

    @pl.when(i == 0)
    def _():
        acc_ref[...] = jnp.zeros_like(acc_ref)

    p = pred_ref[...].astype(jnp.float32)
    t = target_ref[...].astype(jnp.float32)

    if with_logits:
        # BCE with logits (numerically stable):
        #   max(x, 0) - x*t + log(1 + exp(-|x|))
        bce = jnp.maximum(p, 0.0) - p * t + jnp.log1p(jnp.exp(-jnp.abs(p)))
    else:
        # PyTorch F.binary_cross_entropy clamps log terms at -100.
        log_p = jnp.maximum(jnp.log(p), -100.0)
        log_1mp = jnp.maximum(jnp.log(1.0 - p), -100.0)
        bce = -(t * log_p + (1.0 - t) * log_1mp)

    # Fold the (tile_rows, 128) tile into one (8, 128) vreg per quantity using
    # only VPU elementwise adds (no XLU cross-lane reduction in the hot loop).
    tile_rows = p.shape[0]
    r = tile_rows // 8
    t_part = t.reshape(r, 8, _LANES).sum(axis=0)
    b_part = bce.reshape(r, 8, _LANES).sum(axis=0)
    tb_part = (t * bce).reshape(r, 8, _LANES).sum(axis=0)

    acc_ref[0, 0, :, :] += t_part
    acc_ref[0, 1, :, :] += b_part
    acc_ref[0, 2, :, :] += tb_part


def _canon_dtype(x):
    # Keep bf16 slabs in bf16 (halves HBM traffic); everything else -> f32.
    if x.dtype == jnp.float32 or x.dtype == jnp.bfloat16:
        return x
    return x.astype(jnp.float32)


def edge_loss(pred, target, mode: str = "normal"):
    """JAX/Pallas equivalent of EdgeLoss(mode).forward(pred, target)."""
    assert pred.shape == target.shape, "pred/target shape mismatch"
    with_logits = (mode != "normal")

    n = int(pred.size)
    pred = _canon_dtype(pred)
    target = _canon_dtype(target)

    # ---- Choose tiling (rows of 128 lanes), pad to a clean multiple. ----
    rows = -(-n // _LANES)
    # Tile rows: multiple of 16 (safe for bf16 packing), capped at ~1 MiB/block.
    tile_rows = min(_MAX_TILE_ROWS, _round_up(max(1, -(-rows // _NUM_CORES)), 16))
    blocks_per_core = -(-rows // (_NUM_CORES * tile_rows))
    rows_padded = _NUM_CORES * blocks_per_core * tile_rows
    n_padded = rows_padded * _LANES
    pad = n_padded - n

    # Padding values chosen so padded elements contribute exactly 0 to all
    # three partial sums (target=0 and bce=0).
    pred_pad = -1e4 if with_logits else 0.0
    target_pad = 0.0

    pred_flat = pred.reshape(-1)
    target_flat = target.reshape(-1)
    if pad:
        pred_flat = jnp.pad(pred_flat, (0, pad), constant_values=pred_pad)
        target_flat = jnp.pad(target_flat, (0, pad), constant_values=target_pad)
    pred2d = pred_flat.reshape(rows_padded, _LANES)
    target2d = target_flat.reshape(rows_padded, _LANES)

    kernel = functools.partial(_edge_loss_sums_kernel, with_logits=with_logits)

    in_spec = pl.BlockSpec(
        (tile_rows, _LANES),
        lambda c, i: (c * blocks_per_core + i, 0))
    out_spec = pl.BlockSpec(
        (1, 3, 8, _LANES),
        lambda c, i: (c, 0, 0, 0))

    acc = pl.pallas_call(
        kernel,
        out_shape=jax.ShapeDtypeStruct((_NUM_CORES, 3, 8, _LANES), jnp.float32),
        grid_spec=pltpu.PrefetchScalarGridSpec(
            num_scalar_prefetch=0,
            grid=(_NUM_CORES, blocks_per_core),
            in_specs=[in_spec, in_spec],
            out_specs=out_spec,
        ),
        compiler_params=pltpu.CompilerParams(
            dimension_semantics=("parallel", "arbitrary")),
    )(pred2d, target2d)

    # Final tiny reduction (3 * 8 * 128 * NUM_CORES floats) in plain JAX.
    sums = jnp.sum(acc, axis=(0, 2, 3))  # (3,)
    tsum, bsum, tbsum = sums[0], sums[1], sums[2]

    n_f = jnp.float32(n)
    beta = 1.0 - tsum / n_f
    # mean(weights * bce) = ((1-beta)*sum(bce) + (2*beta-1)*sum(t*bce)) / N
    loss = ((1.0 - beta) * bsum + (2.0 * beta - 1.0) * tbsum) / n_f
    return loss


def _reference_edge_loss(pred, target, mode="normal"):
    """Pure-JAX reference mirroring the PyTorch module."""
    pred = pred.astype(jnp.float32)
    target = target.astype(jnp.float32)
    beta = 1.0 - jnp.mean(target)
    weights = 1.0 - beta + (2.0 * beta - 1.0) * target
    if mode == "normal":
        log_p = jnp.maximum(jnp.log(pred), -100.0)
        log_1mp = jnp.maximum(jnp.log(1.0 - pred), -100.0)
        bce = -(target * log_p + (1.0 - target) * log_1mp)
    else:
        bce = (jnp.maximum(pred, 0.0) - pred * target
               + jnp.log1p(jnp.exp(-jnp.abs(pred))))
    return jnp.mean(weights * bce)


if __name__ == "__main__":
    key = jax.random.PRNGKey(0)
    k1, k2 = jax.random.split(key)

    B, C, H, W = 2, 4, 16, 16  # NCHW, 2048 elements total
    # pred: probabilities in (0, 1); target: binary edge map {0, 1}.
    pred = jax.nn.sigmoid(jax.random.normal(k1, (B, C, H, W), dtype=jnp.float32))
    target = (jax.random.uniform(k2, (B, C, H, W)) > 0.7).astype(jnp.float32)

    loss = jax.block_until_ready(edge_loss(pred, target, mode="normal"))
    ref = jax.block_until_ready(_reference_edge_loss(pred, target, mode="normal"))
    assert jnp.allclose(loss, ref, rtol=1e-5, atol=1e-6), (loss, ref)

    # Logits ('with_logits') path.
    logits = jax.random.normal(k1, (B, C, H, W), dtype=jnp.float32)
    loss_l = jax.block_until_ready(edge_loss(logits, target, mode="logits"))
    ref_l = jax.block_until_ready(_reference_edge_loss(logits, target, mode="logits"))
    assert jnp.allclose(loss_l, ref_l, rtol=1e-5, atol=1e-6), (loss_l, ref_l)

    # Ragged shape (not a multiple of 128) exercising the padding path.
    k3, k4 = jax.random.split(k2)
    pred_r = jax.nn.sigmoid(jax.random.normal(k3, (2, 3, 17, 19), dtype=jnp.float32))
    target_r = (jax.random.uniform(k4, (2, 3, 17, 19)) > 0.5).astype(jnp.float32)
    loss_r = jax.block_until_ready(edge_loss(pred_r, target_r, mode="normal"))
    ref_r = jax.block_until_ready(_reference_edge_loss(pred_r, target_r, mode="normal"))
    assert jnp.allclose(loss_r, ref_r, rtol=1e-5, atol=1e-6), (loss_r, ref_r)

    print("KERNEL_OK")
</pallas_src>

<mosaic_0001>
module attributes {stable_mosaic.version = 11 : i64} {
  func.func @_edge_loss_sums_kernel(%arg0: i32, %arg1: i32, %arg2: memref<16x128xf32, #tpu.memory_space<vmem>>, %arg3: memref<16x128xf32, #tpu.memory_space<vmem>>, %arg4: memref<1x3x8x128xf32, #tpu.memory_space<vmem>>) attributes {dimension_semantics = [#tpu.dimension_semantics<parallel>, #tpu.dimension_semantics<arbitrary>], iteration_bounds = array<i64: 2, 1>, scalar_prefetch = 0 : i64, scratch_operands = 0 : i64, tpu.core_type = #tpu.core_type<tc>, window_params = [{transform_indices = @transform_0, window_bounds = array<i64: 16, 128>}, {transform_indices = @transform_1, window_bounds = array<i64: 16, 128>}, {transform_indices = @transform_2, window_bounds = array<i64: 1, 3, 8, 128>}]} {
    %c0_i32 = arith.constant 0 : i32
    %0 = arith.cmpi eq, %arg1, %c0_i32 : i32
    %1 = arith.extui %0 : i1 to i32
    %c0_i32_0 = arith.constant 0 : i32
    %2 = arith.cmpi ne, %1, %c0_i32_0 : i32
    scf.if %2 {
      %cst_33 = arith.constant 0.000000e+00 : f32
      %45 = vector.broadcast %cst_33 : f32 to vector<1x3x8x128xf32>
      %c0_34 = arith.constant 0 : index
      %c0_35 = arith.constant 0 : index
      %c0_36 = arith.constant 0 : index
      %c0_37 = arith.constant 0 : index
      %46 = vector.load %arg4[%c0_34, %c0_35, %c0_36, %c0_37] : memref<1x3x8x128xf32, #tpu.memory_space<vmem>>, vector<1x3x8x128xf32>
      tpu.vector_store %arg4[%c0_34, %c0_35, %c0_36, %c0_37], %45 {strides = array<i32>} : memref<1x3x8x128xf32, #tpu.memory_space<vmem>>, vector<1x3x8x128xf32>,
    } else {
    }
    %c0 = arith.constant 0 : index
    %c0_1 = arith.constant 0 : index
    %3 = vector.load %arg2[%c0, %c0_1] : memref<16x128xf32, #tpu.memory_space<vmem>>, vector<16x128xf32>
    %c0_2 = arith.constant 0 : index
    %c0_3 = arith.constant 0 : index
    %4 = vector.load %arg3[%c0_2, %c0_3] : memref<16x128xf32, #tpu.memory_space<vmem>>, vector<16x128xf32>
    %5 = math.log %3 : vector<16x128xf32>
    %cst = arith.constant -1.000000e+02 : f32
    %6 = vector.broadcast %cst : f32 to vector<16x128xf32>
    %7 = arith.maximumf %5, %6 : vector<16x128xf32>
    %cst_4 = arith.constant 1.000000e+00 : f32
    %8 = vector.broadcast %cst_4 : f32 to vector<16x128xf32>
    %9 = arith.subf %8, %3 : vector<16x128xf32>
    %10 = math.log %9 : vector<16x128xf32>
    %cst_5 = arith.constant -1.000000e+02 : f32
    %11 = vector.broadcast %cst_5 : f32 to vector<16x128xf32>
    %12 = arith.maximumf %10, %11 : vector<16x128xf32>
    %13 = arith.mulf %4, %7 : vector<16x128xf32>
    %cst_6 = arith.constant 1.000000e+00 : f32
    %14 = vector.broadcast %cst_6 : f32 to vector<16x128xf32>
    %15 = arith.subf %14, %4 : vector<16x128xf32>
    %16 = arith.mulf %15, %12 : vector<16x128xf32>
    %17 = arith.addf %13, %16 : vector<16x128xf32>
    %cst_7 = arith.constant 0.000000e+00 : f32
    %18 = vector.broadcast %cst_7 : f32 to vector<16x128xf32>
    %19 = arith.subf %18, %17 : vector<16x128xf32>
    %20 = vector.shape_cast %4 : vector<16x128xf32> to vector<2x8x128xf32>
    %cst_8 = arith.constant dense<0.000000e+00> : vector<8x128xf32>
    %21 = vector.multi_reduction <add>, %20, %cst_8 [0] : vector<2x8x128xf32> to vector<8x128xf32>
    %22 = vector.shape_cast %19 : vector<16x128xf32> to vector<2x8x128xf32>
    %cst_9 = arith.constant dense<0.000000e+00> : vector<8x128xf32>
    %23 = vector.multi_reduction <add>, %22, %cst_9 [0] : vector<2x8x128xf32> to vector<8x128xf32>
    %24 = arith.mulf %4, %19 : vector<16x128xf32>
    %25 = vector.shape_cast %24 : vector<16x128xf32> to vector<2x8x128xf32>
    %cst_10 = arith.constant dense<0.000000e+00> : vector<8x128xf32>
    %26 = vector.multi_reduction <add>, %25, %cst_10 [0] : vector<2x8x128xf32> to vector<8x128xf32>
    %c0_11 = arith.constant 0 : index
    %c0_12 = arith.constant 0 : index
    %c0_13 = arith.constant 0 : index
    %c0_14 = arith.constant 0 : index
    %27 = vector.load %arg4[%c0_11, %c0_12, %c0_13, %c0_14] : memref<1x3x8x128xf32, #tpu.memory_space<vmem>>, vector<1x1x8x128xf32>
    %28 = vector.shape_cast %27 : vector<1x1x8x128xf32> to vector<8x128xf32>
    %29 = arith.addf %28, %21 : vector<8x128xf32>
    %c0_15 = arith.constant 0 : index
    %c0_16 = arith.constant 0 : index
    %c0_17 = arith.constant 0 : index
    %c0_18 = arith.constant 0 : index
    %30 = vector.load %arg4[%c0_15, %c0_16, %c0_17, %c0_18] : memref<1x3x8x128xf32, #tpu.memory_space<vmem>>, vector<1x1x8x128xf32>
    %31 = vector.shape_cast %30 : vector<1x1x8x128xf32> to vector<8x128xf32>
    %32 = vector.shape_cast %29 : vector<8x128xf32> to vector<1x1x8x128xf32>
    tpu.vector_store %arg4[%c0_15, %c0_16, %c0_17, %c0_18], %32 {strides = array<i32>} : memref<1x3x8x128xf32, #tpu.memory_space<vmem>>, vector<1x1x8x128xf32>,
    %c0_19 = arith.constant 0 : index
    %c1 = arith.constant 1 : index
    %c0_20 = arith.constant 0 : index
    %c0_21 = arith.constant 0 : index
    %33 = vector.load %arg4[%c0_19, %c1, %c0_20, %c0_21] : memref<1x3x8x128xf32, #tpu.memory_space<vmem>>, vector<1x1x8x128xf32>
    %34 = vector.shape_cast %33 : vector<1x1x8x128xf32> to vector<8x128xf32>
    %35 = arith.addf %34, %23 : vector<8x128xf32>
    %c0_22 = arith.constant 0 : index
    %c1_23 = arith.constant 1 : index
    %c0_24 = arith.constant 0 : index
    %c0_25 = arith.constant 0 : index
    %36 = vector.load %arg4[%c0_22, %c1_23, %c0_24, %c0_25] : memref<1x3x8x128xf32, #tpu.memory_space<vmem>>, vector<1x1x8x128xf32>
    %37 = vector.shape_cast %36 : vector<1x1x8x128xf32> to vector<8x128xf32>
    %38 = vector.shape_cast %35 : vector<8x128xf32> to vector<1x1x8x128xf32>
    tpu.vector_store %arg4[%c0_22, %c1_23, %c0_24, %c0_25], %38 {strides = array<i32>} : memref<1x3x8x128xf32, #tpu.memory_space<vmem>>, vector<1x1x8x128xf32>,
    %c0_26 = arith.constant 0 : index
    %c2 = arith.constant 2 : index
    %c0_27 = arith.constant 0 : index
    %c0_28 = arith.constant 0 : index
    %39 = vector.load %arg4[%c0_26, %c2, %c0_27, %c0_28] : memref<1x3x8x128xf32, #tpu.memory_space<vmem>>, vector<1x1x8x128xf32>
    %40 = vector.shape_cast %39 : vector<1x1x8x128xf32> to vector<8x128xf32>
    %41 = arith.addf %40, %26 : vector<8x128xf32>
    %c0_29 = arith.constant 0 : index
    %c2_30 = arith.constant 2 : index
    %c0_31 = arith.constant 0 : index
    %c0_32 = arith.constant 0 : index
    %42 = vector.load %arg4[%c0_29, %c2_30, %c0_31, %c0_32] : memref<1x3x8x128xf32, #tpu.memory_space<vmem>>, vector<1x1x8x128xf32>
    %43 = vector.shape_cast %42 : vector<1x1x8x128xf32> to vector<8x128xf32>
    %44 = vector.shape_cast %41 : vector<8x128xf32> to vector<1x1x8x128xf32>
    tpu.vector_store %arg4[%c0_29, %c2_30, %c0_31, %c0_32], %44 {strides = array<i32>} : memref<1x3x8x128xf32, #tpu.memory_space<vmem>>, vector<1x1x8x128xf32>,
    return
  }
  func.func @transform_0(%arg0: i32, %arg1: i32) -> (i32, i32) {
    %c1_i32 = arith.constant 1 : i32
    %0 = arith.muli %arg0, %c1_i32 : i32
    %1 = arith.addi %0, %arg1 : i32
    %c0_i32 = arith.constant 0 : i32
    %c0_i32_0 = arith.constant 0 : i32
    return %1, %c0_i32 : i32, i32
  }
  func.func @transform_1(%arg0: i32, %arg1: i32) -> (i32, i32) {
    %c1_i32 = arith.constant 1 : i32
    %0 = arith.muli %arg0, %c1_i32 : i32
    %1 = arith.addi %0, %arg1 : i32
    %c0_i32 = arith.constant 0 : i32
    %c0_i32_0 = arith.constant 0 : i32
    return %1, %c0_i32 : i32, i32
  }
  func.func @transform_2(%arg0: i32, %arg1: i32) -> (i32, i32, i32, i32) {
    %c0_i32 = arith.constant 0 : i32
    %c0_i32_0 = arith.constant 0 : i32
    %c0_i32_1 = arith.constant 0 : i32
    %c0_i32_2 = arith.constant 0 : i32
    return %arg0, %c0_i32, %c0_i32_0, %c0_i32_1 : i32, i32, i32, i32
  }
}

</mosaic_0001>

<llo_original>
// kernel: tpu_custom_call.1
$region0: #{tpu_custom_call.1}
  #allocation0 [shape = 'u32[]', space=smem, size = 0x4, offset = 0x4, fixed_abs, tag = 'smem constant byte address 0x4 - core index']
  #allocation1 [shape = 'u32[144,128]{1,0:T(1,128)}', space=vmem, size = 0x12000, scoped, tag = 'internal scratch']
  %s0 = inlined_call_operand.hbm [shape: f32[32,128], index: 0, kind: input, shape index: {}]
  %s1 = inlined_call_operand.hbm [shape: f32[32,128], index: 1, kind: input, shape index: {}]
  %s2 = inlined_call_operand.hbm [shape: f32[2,3,8,128], index: 2, kind: output, shape index: {}]
  %s3 = sld [smem:[#allocation0]]
  $region53: #{tpu_custom_call.1} parent=0
    _
  %s5 = ssub.s32 1, %s3
  %s6 = scalar_select 0, %s5, %s3
  $region1: #{tpu_custom_call.1} parent=0
    #allocation2 [shape = 'u8[16384]{0}', space=vmem, size = 0x4000, scoped, tag = 'input window, operand 0']
    #allocation3 [shape = 's32[2]{0}', space=sflag, size = 0x8, scoped, tag = 'scoped memory for tpu_custom_call.1']
    #allocation4 [shape = 's32[2]{0}', space=sflag, size = 0x8, scoped, tag = 'scoped memory for tpu_custom_call.1']
    #allocation5 [shape = 'u8[16384]{0}', space=vmem, size = 0x4000, scoped, tag = 'input window, operand 1']
    #allocation6 [shape = 's32[2]{0}', space=sflag, size = 0x8, scoped, tag = 'scoped memory for tpu_custom_call.1']
    #allocation7 [shape = 'u8[24576]{0}', space=vmem, size = 0x6000, scoped, tag = 'output window, operand 0']
    %7 = vsyncpa [#allocation3], 0
    %s8 = scalar_lea.sflag [#allocation3], 1
    %9 = vsyncpa %s8, 0
    %10 = vsyncpa [#allocation6], 0
    %s11 = scalar_lea.sflag [#allocation6], 1
    %12 = vsyncpa %s11, 0
    %13 = vsyncpa [#allocation4], 0
    %s14 = scalar_lea.sflag [#allocation4], 1
    %15 = vsyncpa %s14, 0
    loop: start=0, step=1, limit=4
    $region2: #{tpu_custom_call.1} parent=1 // loop_pre_header
      _
    $region3: #{tpu_custom_call.1} parent=1 // loop_header
      %s17 = sphi 0, %s21
      %p18 = scmp.ge.s32.totalorder %s17, 4
      %s24 = sphi 0, %s36
      %s25 = sphi 0, %s32
      %s26 = sphi 0, %s24
      %s27 = sphi 0, %s25
      %s28 = sphi 0, %s26
      %s29 = sphi 0, %s27
      %s41 = sphi 0, %s43
      %s44 = sphi 0, %s41
      %s45 = sphi 0, %s44
      %s61 = sphi 0, %s45
      %s69 = sphi 0, %s71
      %s72 = sphi 0, %s69
      %s73 = sphi 0, %s72
      %s89 = sphi 0, %s73
      %s95 = sphi 0, %s97
      %s98 = sphi 0, %s95
      %s99 = sphi 0, %s98
      %s115 = sphi 0, %s99
    $region4: #{tpu_custom_call.1} parent=1 // loop_header_branch
      %20 = sbr.rel (%p18) target = $region8
    $region5: #{tpu_custom_call.1} parent=1 // loop_body
      %s22 = ssub.s32 %s17, 1
      %s23 = ssub.s32 %s17, 2
      %s30 = sadd.s32 1, %s25
      %p31 = scmp.ge.s32.totalorder %s30, 1
      %s32 = scalar_select %p31, 0, %s30
      %s33 = sadd.s32 1, %s24
      %s34 = scalar_select %p31, %s33, %s24
      %p35 = scmp.ge.s32.totalorder %s34, 2
      %s36 = scalar_select %p35, 0, %s34
      %s37 = sadd.s32 %s24, %s25
      %s38 = sadd.s32 %s36, %s32
      %s39 = ssub.s32 %s37, %s38
      %p40 = scmp.eq.s32.totalorder %s39, 0
      %s42 = sadd.s32 %s41, 1
      %s43 = scalar_select %p40, %s41, %s42
      %p46 = pneg %p40
      %p47 = scmp.eq.s32.totalorder %s17, 1
      %p48 = por %p46, %p47
      %p49 = scmp.ne.s32.totalorder %s41, %s44
      %p50 = scmp.eq.s32.totalorder %s17, 0
      %p51 = por %p49, %p50
      %p52 = scmp.ne.s32.totalorder %s41, %s44
      %p53 = scmp.eq.s32.totalorder %s22, 1
      %p54 = por %p52, %p53
      %p55 = scmp.ne.s32.totalorder %s44, %s45
      %p56 = scmp.eq.s32.totalorder %s22, 0
      %p57 = por %p55, %p56
      %p58 = scmp.ne.s32.totalorder %s44, %s45
      %p59 = scmp.eq.s32.totalorder %s23, 1
      %p60 = por %p58, %p59
      %p62 = scmp.ne.s32.totalorder %s45, %s61
      %p63 = scmp.eq.s32.totalorder %s23, 0
      %p64 = por %p62, %p63
      %s65 = sadd.s32 %s24, %s25
      %s66 = sadd.s32 %s36, %s32
      %s67 = ssub.s32 %s65, %s66
      %p68 = scmp.eq.s32.totalorder %s67, 0
      %s70 = sadd.s32 %s69, 1
      %s71 = scalar_select %p68, %s69, %s70
      %p74 = pneg %p68
      %p75 = scmp.eq.s32.totalorder %s17, 1
      %p76 = por %p74, %p75
      %p77 = scmp.ne.s32.totalorder %s69, %s72
      %p78 = scmp.eq.s32.totalorder %s17, 0
      %p79 = por %p77, %p78
      %p80 = scmp.ne.s32.totalorder %s69, %s72
      %p81 = scmp.eq.s32.totalorder %s22, 1
      %p82 = por %p80, %p81
      %p83 = scmp.ne.s32.totalorder %s72, %s73
      %p84 = scmp.eq.s32.totalorder %s22, 0
      %p85 = por %p83, %p84
      %p86 = scmp.ne.s32.totalorder %s72, %s73
      %p87 = scmp.eq.s32.totalorder %s23, 1
      %p88 = por %p86, %p87
      %p90 = scmp.ne.s32.totalorder %s73, %s89
      %p91 = scmp.eq.s32.totalorder %s23, 0
      %p92 = por %p90, %p91
      %s93 = ssub.s32 %s24, %s36
      %p94 = scmp.eq.s32.totalorder %s93, 0
      %s96 = sadd.s32 %s95, 1
      %s97 = scalar_select %p94, %s95, %s96
      %p100 = pneg %p94
      %p101 = scmp.eq.s32.totalorder %s17, 1
      %p102 = por %p100, %p101
      %p103 = scmp.ne.s32.totalorder %s95, %s98
      %p104 = scmp.eq.s32.totalorder %s17, 0
      %p105 = por %p103, %p104
      %p106 = scmp.ne.s32.totalorder %s95, %s98
      %p107 = scmp.eq.s32.totalorder %s22, 1
      %p108 = por %p106, %p107
      %p109 = scmp.ne.s32.totalorder %s98, %s99
      %p110 = scmp.eq.s32.totalorder %s22, 0
      %p111 = por %p109, %p110
      %p112 = scmp.ne.s32.totalorder %s98, %s99
      %p113 = scmp.eq.s32.totalorder %s23, 1
      %p114 = por %p112, %p113
      %p116 = scmp.ne.s32.totalorder %s99, %s115
      %p117 = scmp.eq.s32.totalorder %s23, 0
      %p118 = por %p116, %p117
      %p119 = scmp.le.s32.totalorder 1, %s17
      %p120 = scmp.lt.s32.totalorder %s17, 3
      %p121 = pnand %p119, %p120
      %p122 = pneg %p121
      // Predicated region
      $region9: #{tpu_custom_call.1} parent=5 // pred_check
        _
      $region10: #{tpu_custom_call.1} parent=5 // pred_check_branch
        %124 = sbr.rel (%p121) target = $region12
      $region11: #{tpu_custom_call.1} parent=5 // pred_region
        %s125 = ssub.s32 %s17, 1
      $region12: #{tpu_custom_call.1} parent=5 // pred_fallthru
        _
      %p126 = scmp.lt.s32.totalorder %s17, 2
      // Predicated region
      $region13: #{tpu_custom_call.1} parent=5 // pred_check
        %p127 = pneg %p126
      $region14: #{tpu_custom_call.1} parent=5 // pred_check_branch
        %129 = sbr.rel (%p127) target = $region16
      $region15: #{tpu_custom_call.1} parent=5 // pred_region
        // Predicated region
        $region17: #{tpu_custom_call.1} parent=15 // pred_check
          %p130 = pneg %p51
        $region18: #{tpu_custom_call.1} parent=15 // pred_check_branch
          %132 = sbr.rel (%p130) target = $region20
        $region19: #{tpu_custom_call.1} parent=15 // pred_region
          %s133 = sand.u32 %s41, 1
          %s134 = scalar_lea.sflag [#allocation3], %s133
          %s135 = sand.u32 %s41, 1
          %s136 = smul.addr %s135, 16
          %s137 = scalar_lea.vmem [#allocation2], %s136
          %s138 = sadd.s32 %s24, %s25
          %s139 = smul.u32 2, %s138
          %s141 = ssub.s32 256, 256
          %142 = vsyncadd %s134, %s141
          %s143 = smul.addr %s139, 128
          %s144 = scalar_lea.hbm %s0, %s143
          %s145 = sshll.u32 %s137, 4
          %s146 = int_to_ptr.vmem [resolvable:$true] %s145
          %151 = dma.hbm_to_vmem [thread:$0]  %s144, 256, %s146, %s134, 128, 128, 8
        $region20: #{tpu_custom_call.1} parent=15 // pred_fallthru
          _
        // Predicated region
        $region21: #{tpu_custom_call.1} parent=15 // pred_check
          %p152 = pneg %p79
        $region22: #{tpu_custom_call.1} parent=15 // pred_check_branch
          %154 = sbr.rel (%p152) target = $region24
        $region23: #{tpu_custom_call.1} parent=15 // pred_region
          %s155 = sand.u32 %s69, 1
          %s156 = scalar_lea.sflag [#allocation6], %s155
          %s157 = sand.u32 %s69, 1
          %s158 = smul.addr %s157, 16
          %s159 = scalar_lea.vmem [#allocation5], %s158
          %s160 = sadd.s32 %s24, %s25
          %s161 = smul.u32 2, %s160
          %s163 = ssub.s32 256, 256
          %164 = vsyncadd %s156, %s163
          %s165 = smul.addr %s161, 128
          %s166 = scalar_lea.hbm %s1, %s165
          %s167 = sshll.u32 %s159, 4
          %s168 = int_to_ptr.vmem [resolvable:$true] %s167
          %173 = dma.hbm_to_vmem [thread:$0]  %s166, 256, %s168, %s156, 128, 128, 8
        $region24: #{tpu_custom_call.1} parent=15 // pred_fallthru
          _
      $region16: #{tpu_custom_call.1} parent=5 // pred_fallthru
        _
      %p174 = scmp.le.s32.totalorder 1, %s17
      %p175 = scmp.lt.s32.totalorder %s17, 3
      %p176 = pnand %p174, %p175
      %p177 = pneg %p176
      // Predicated region
      $region25: #{tpu_custom_call.1} parent=5 // pred_check
        _
      $region26: #{tpu_custom_call.1} parent=5 // pred_check_branch
        %179 = sbr.rel (%p176) target = $region28
      $region27: #{tpu_custom_call.1} parent=5 // pred_region
        %s180 = ssub.s32 %s17, 1
        %s181 = sand.u32 %s44, 1
        %s182 = scalar_lea.sflag [#allocation3], %s181
        %s183 = sand.u32 %s44, 1
        %s184 = smul.addr %s183, 16
        %s185 = scalar_lea.vmem [#allocation2], %s184
        // Predicated region
        $region29: #{tpu_custom_call.1} parent=27 // pred_check
          %p186 = pneg %p57
        $region30: #{tpu_custom_call.1} parent=27 // pred_check_branch
          %188 = sbr.rel (%p186) target = $region32
        $region31: #{tpu_custom_call.1} parent=27 // pred_region
          %189 = dma.done %s182, 256
        $region32: #{tpu_custom_call.1} parent=27 // pred_fallthru
          _
        %s190 = sand.u32 %s72, 1
        %s191 = scalar_lea.sflag [#allocation6], %s190
        %s192 = sand.u32 %s72, 1
        %s193 = smul.addr %s192, 16
        %s194 = scalar_lea.vmem [#allocation5], %s193
        // Predicated region
        $region33: #{tpu_custom_call.1} parent=27 // pred_check
          %p195 = pneg %p85
        $region34: #{tpu_custom_call.1} parent=27 // pred_check_branch
          %197 = sbr.rel (%p195) target = $region36
        $region35: #{tpu_custom_call.1} parent=27 // pred_region
          %198 = dma.done %s191, 256
        $region36: #{tpu_custom_call.1} parent=27 // pred_fallthru
          _
        %s199 = sand.u32 %s44, 1
        %s200 = scalar_lea.sflag [#allocation3], %s199
        %s201 = sand.u32 %s44, 1
        %s202 = smul.addr %s201, 16
        %s203 = scalar_lea.vmem [#allocation2], %s202
        %p204 = pneg %p57
        %p205 = pneg %p54
        %s206 = sand.u32 %s72, 1
        %s207 = scalar_lea.sflag [#allocation6], %s206
        %s208 = sand.u32 %s72, 1
        %s209 = smul.addr %s208, 16
        %s210 = scalar_lea.vmem [#allocation5], %s209
        %p211 = pneg %p85
        %p212 = pneg %p82
        %p213 = pneg %p111
        %p214 = pneg %p108
        %s215 = sand.u32 %s98, 1
        %s216 = scalar_lea.sflag [#allocation4], %s215
        %s217 = sand.u32 %s98, 1
        %s218 = smul.addr %s217, 24
        %s219 = scalar_lea.vmem [#allocation7], %s218
        %s220 = sadd.s32 %s26, %s27
        %s221 = smul.u32 2, %s220
        %s222 = sadd.s32 %s26, %s27
        %s223 = smul.u32 2, %s222
        %p224 = scmp.eq.s32.totalorder %s27, 0
        // Predicated region
        $region37: #{tpu_custom_call.1} parent=27 // pred_check
          %p225 = pneg %p224
        $region38: #{tpu_custom_call.1} parent=27 // pred_check_branch
          %227 = sbr.rel (%p225) target = $region40
        $region39: #{tpu_custom_call.1} parent=27 // pred_region
          %228 = vst [vmem:[%s219] sm:$0xff] 0.0
          %229 = vst [vmem:[%s219 + $0x8] sm:$0xff] 0.0
          %230 = vst [vmem:[%s219 + $0x10] sm:$0xff] 0.0
        $region40: #{tpu_custom_call.1} parent=27 // pred_fallthru
          _
        %v231 = vld [vmem:[%s185] sm:$0xff]
        %v232 = vld [vmem:[%s185 + $0x8] sm:$0xff]
        %v233 = vld [vmem:[%s194] sm:$0xff]
        %v234 = vld [vmem:[%s194 + $0x8] sm:$0xff]
        %v235 = vlog2.pop %v231
        %v236 = vmul.f32 %v235, 0.6931472
        %v237 = vlog2.pop %v232
        %v238 = vmul.f32 %v237, 0.6931472
        %v239 = vmax.f32 %v236, -100.0
        %v240 = vmax.f32 %v238, -100.0
        %v241 = vsub.f32 1.0, %v231
        %v242 = vsub.f32 1.0, %v232
        %v243 = vlog2.pop %v241
        %v244 = vmul.f32 %v243, 0.6931472
        %v245 = vlog2.pop %v242
        %v246 = vmul.f32 %v245, 0.6931472
        %v247 = vmax.f32 %v244, -100.0
        %v248 = vmax.f32 %v246, -100.0
        %v249 = vmul.f32 %v233, %v239
        %v250 = vmul.f32 %v234, %v240
        %v251 = vsub.f32 1.0, %v233
        %v252 = vsub.f32 1.0, %v234
        %v253 = vmul.f32 %v251, %v247
        %v254 = vmul.f32 %v252, %v248
        %v255 = vadd.f32 %v249, %v253
        %v256 = vadd.f32 %v250, %v254
        %v257 = vsub.f32 0.0, %v255
        %v258 = vsub.f32 0.0, %v256
        %v259 = vadd.f32 %v233, %v234
        %v260 = vadd.f32 %v257, %v258
        %v261 = vmul.f32 %v233, %v257
        %v262 = vmul.f32 %v234, %v258
        %v263 = vadd.f32 %v261, %v262
        %v264 = vld [vmem:[%s219] sm:$0xff]
        %v265 = vadd.f32 %v264, %v259
        %266 = vst [vmem:[%s219] sm:$0xff] %v265
        %s267 = scalar_lea.vmem %s219, 8 [#allocation7]
        %v268 = vld [vmem:[%s267] sm:$0xff]
        %v269 = vadd.f32 %v268, %v260
        %270 = vst [vmem:[%s267] sm:$0xff] %v269
        %s271 = scalar_lea.vmem %s219, 16 [#allocation7]
        %v272 = vld [vmem:[%s271] sm:$0xff]
        %v273 = vadd.f32 %v272, %v263
        %274 = vst [vmem:[%s271] sm:$0xff] %v273
        %s275 = sand.u32 %s98, 1
        %s276 = scalar_lea.sflag [#allocation4], %s275
        %s277 = sand.u32 %s98, 1
        %s278 = smul.addr %s277, 24
        %s279 = scalar_lea.vmem [#allocation7], %s278
        // Predicated region
        $region41: #{tpu_custom_call.1} parent=27 // pred_check
          %p280 = pneg %p108
        $region42: #{tpu_custom_call.1} parent=27 // pred_check_branch
          %282 = sbr.rel (%p280) target = $region44
        $region43: #{tpu_custom_call.1} parent=27 // pred_region
          %s284 = ssub.s32 384, 384
          %285 = vsyncadd %s276, %s284
          %s286 = smul.addr %s26, 3
          %s287 = smul.addr %s286, 128
          %s288 = scalar_lea.hbm %s2, %s287
          %s289 = sshll.u32 %s279, 4
          %s290 = int_to_ptr.vmem [resolvable:$true] %s289
          %295 = dma.vmem_to_hbm [thread:$0]  %s290, 384, %s288, %s276, 128, 128, 8
        $region44: #{tpu_custom_call.1} parent=27 // pred_fallthru
          _
      $region28: #{tpu_custom_call.1} parent=5 // pred_fallthru
        _
      %p296 = scmp.le.s32.totalorder 2, %s17
      // Predicated region
      $region45: #{tpu_custom_call.1} parent=5 // pred_check
        %p297 = pneg %p296
      $region46: #{tpu_custom_call.1} parent=5 // pred_check_branch
        %299 = sbr.rel (%p297) target = $region48
      $region47: #{tpu_custom_call.1} parent=5 // pred_region
        %s300 = ssub.s32 %s17, 2
        // Predicated region
        $region49: #{tpu_custom_call.1} parent=47 // pred_check
          %p301 = pneg %p114
        $region50: #{tpu_custom_call.1} parent=47 // pred_check_branch
          %303 = sbr.rel (%p301) target = $region52
        $region51: #{tpu_custom_call.1} parent=47 // pred_region
          %s304 = sand.u32 %s99, 1
          %s305 = scalar_lea.sflag [#allocation4], %s304
          %s306 = sand.u32 %s99, 1
          %s307 = smul.addr %s306, 24
          %s308 = scalar_lea.vmem [#allocation7], %s307
          %309 = dma.done %s305, 384
        $region52: #{tpu_custom_call.1} parent=47 // pred_fallthru
          _
      $region48: #{tpu_custom_call.1} parent=5 // pred_fallthru
        _
    $region6: #{tpu_custom_call.1} parent=1 // loop_footer
      %s21 = sadd.s32 1, %s17
    $region7: #{tpu_custom_call.1} parent=1 // loop_footer_branch
      %16 = sbr.rel target = $region3
    $region8: #{tpu_custom_call.1} parent=1 // loop_exit
      _
    %310 = vsyncpa [#allocation3], 1
    %s311 = scalar_lea.sflag [#allocation3], 1
    %312 = vsyncpa %s311, 1
    %313 = vsyncpa [#allocation6], 1
    %s314 = scalar_lea.sflag [#allocation6], 1
    %315 = vsyncpa %s314, 1
    %316 = vsyncpa [#allocation4], 1
    %s317 = scalar_lea.sflag [#allocation4], 1
    %318 = vsyncpa %s317, 1

</llo_original>
